<compile_context>
chip_gen: v5e
topology: v5e:2x2
jax: 0.10.0
libtpu: 0.0.40
codegen_flags: <defaults>
</compile_context>

<pallas_src>
import math

import jax
import jax.numpy as jnp
from jax import lax
from jax.experimental import pallas as pl
from jax.experimental.pallas import tpu as pltpu

EPS = 1e-6


def _pick_tile(n, target):
    """Largest tile t <= target with n % t == 0 and t a multiple of 8 (else n)."""
    if n <= target:
        return n
    for t in range(target - target % 8, 0, -8):
        if n % t == 0:
            return t
    return n


def _layernorm(x, a, b, eps):
    # Matches torch: mean over last dim, std UNBIASED (N-1), a*(x-mean)/(std+eps)+b
    d = x.shape[-1]
    mean = jnp.mean(x, axis=-1, keepdims=True)
    var = jnp.sum((x - mean) ** 2, axis=-1, keepdims=True) * (1.0 / (d - 1))
    std = jnp.sqrt(var)
    # Reciprocal-multiply instead of a per-element divide.  approx=False keeps
    # full f32 accuracy; flip to approx=True if ~1e-3 LN error is acceptable.
    inv = pl.reciprocal(std + eps, approx=False)
    return a * (x - mean) * inv + b


# ----------------------------- flag == False ------------------------------ #
def _resnet_ffn_kernel(x_ref, a_ref, b_ref, w_ref, bias_ref, o_ref):
    x = x_ref[...].astype(jnp.float32)                  # (TR, D) rows
    nx = _layernorm(x, a_ref[0], b_ref[0], EPS)
    y = jnp.dot(nx.astype(w_ref.dtype), w_ref[...],
                preferred_element_type=jnp.float32) + bias_ref[0]
    o_ref[...] = (x + y).astype(o_ref.dtype)            # residual (dropout = id)


def resnet_ffn(x, ln_a, ln_b, w, bias, *, row_block=256, vmem_limit_bytes=None):
    B, S, D = x.shape
    N = B * S
    TR = _pick_tile(N, row_block)                       # multiple of 8 or full N
    x2 = x.reshape(N, D)                                # lane-dense row slab
    a2, b2, bias2 = ln_a.reshape(1, D), ln_b.reshape(1, D), bias.reshape(1, D)

    out = pl.pallas_call(
        _resnet_ffn_kernel,
        out_shape=jax.ShapeDtypeStruct((N, D), x.dtype),
        grid_spec=pltpu.PrefetchScalarGridSpec(
            num_scalar_prefetch=0,
            grid=(N // TR,),
            in_specs=[
                pl.BlockSpec((TR, D), lambda i: (i, 0)),
                pl.BlockSpec((1, D), lambda i: (0, 0)),
                pl.BlockSpec((1, D), lambda i: (0, 0)),
                pl.BlockSpec((D, D), lambda i: (0, 0)),
                pl.BlockSpec((1, D), lambda i: (0, 0)),
            ],
            out_specs=pl.BlockSpec((TR, D), lambda i: (i, 0)),
        ),
        compiler_params=pltpu.CompilerParams(
            dimension_semantics=("parallel",),
            vmem_limit_bytes=vmem_limit_bytes,
        ),
    )(x2, a2, b2, w, bias2)
    return out.reshape(B, S, D)


# ------------------------------ flag == True ------------------------------ #
def _resnet_attn_kernel(x_ref, a_ref, b_ref, wqkv_ref, o_ref, s_ref,
                        q_s, k_s, v_s):
    S = x_ref.shape[1]
    D = x_ref.shape[2]
    TQ = o_ref.shape[1]
    qi = pl.program_id(1)

    # Compute fused QKV projection once per batch element (first q-tile);
    # scratch persists across the (arbitrary) q-tile axis.
    @pl.when(qi == 0)
    def _():
        nx = _layernorm(x_ref[0].astype(jnp.float32), a_ref[0], b_ref[0], EPS)
        qkv = jnp.dot(nx.astype(wqkv_ref.dtype), wqkv_ref[...],
                      preferred_element_type=jnp.float32)       # (S, 3D)
        q_s[...] = qkv[:, :D]
        k_s[...] = qkv[:, D:2 * D]
        v_s[...] = qkv[:, 2 * D:]

    row0 = qi * TQ
    if TQ % 8 == 0:
        row0 = pl.multiple_of(row0, 8)

    q = q_s[pl.ds(row0, TQ), :]                                  # (TQ, D)
    # q @ k^T without an explicit transpose: contract last dims directly.
    logits = lax.dot_general(q, k_s[...], (((1,), (1,)), ((), ())),
                             preferred_element_type=jnp.float32)
    logits = logits * (1.0 / math.sqrt(D))
    logits = logits - jnp.max(logits, axis=-1, keepdims=True)
    e = jnp.exp(logits)
    attn = e * pl.reciprocal(jnp.sum(e, axis=-1, keepdims=True), approx=True)
    out = jnp.dot(attn.astype(v_s.dtype), v_s[...],
                  preferred_element_type=jnp.float32)            # (TQ, D)

    x_tile = x_ref[0, pl.ds(row0, TQ), :].astype(jnp.float32)
    o_ref[0] = (x_tile + out).astype(o_ref.dtype)                # residual (dropout = id)
    s_ref[0] = attn.astype(s_ref.dtype)                          # attention scores


def resnet_self_attn(x, ln_a, ln_b, wq, wk, wv, *, q_block=256,
                     vmem_limit_bytes=None):
    B, S, D = x.shape
    TQ = _pick_tile(S, q_block)                         # multiple of 8 or full S
    n_q = S // TQ
    a2, b2 = ln_a.reshape(1, D), ln_b.reshape(1, D)
    wqkv = jnp.concatenate([wq, wk, wv], axis=1)        # fused (D, 3D) projection

    return pl.pallas_call(
        _resnet_attn_kernel,
        out_shape=(
            jax.ShapeDtypeStruct((B, S, D), x.dtype),
            jax.ShapeDtypeStruct((B, S, S), jnp.float32),
        ),
        grid_spec=pltpu.PrefetchScalarGridSpec(
            num_scalar_prefetch=0,
            grid=(B, n_q),
            in_specs=[
                # Full-sequence x block; index constant along q -> DMA'd once per b.
                pl.BlockSpec((1, S, D), lambda b, q: (b, 0, 0)),
                pl.BlockSpec((1, D), lambda b, q: (0, 0)),
                pl.BlockSpec((1, D), lambda b, q: (0, 0)),
                pl.BlockSpec((D, 3 * D), lambda b, q: (0, 0)),
            ],
            out_specs=(
                pl.BlockSpec((1, TQ, D), lambda b, q: (b, q, 0)),
                pl.BlockSpec((1, TQ, S), lambda b, q: (b, q, 0)),
            ),
            scratch_shapes=[
                pltpu.VMEM((S, D), jnp.float32),   # Q
                pltpu.VMEM((S, D), jnp.float32),   # K
                pltpu.VMEM((S, D), jnp.float32),   # V
            ],
        ),
        # q axis must be "arbitrary": q-tiles > 0 reuse scratch written at q == 0.
        compiler_params=pltpu.CompilerParams(
            dimension_semantics=("parallel", "arbitrary"),
            vmem_limit_bytes=vmem_limit_bytes,
        ),
    )(x, a2, b2, wqkv)


# ---------------------------- pure-JAX reference --------------------------- #
def _ref_layernorm(x, a, b, eps):
    d = x.shape[-1]
    mean = jnp.mean(x, axis=-1, keepdims=True)
    var = jnp.sum((x - mean) ** 2, axis=-1, keepdims=True) / (d - 1)
    return a * (x - mean) / (jnp.sqrt(var) + eps) + b


def _ref_ffn(x, a, b, w, bias):
    nx = _ref_layernorm(x, a, b, EPS)
    return x + (jnp.einsum("bsd,de->bse", nx, w) + bias)


def _ref_attn(x, a, b, wq, wk, wv):
    nx = _ref_layernorm(x, a, b, EPS)
    q = jnp.einsum("bsd,de->bse", nx, wq)
    k = jnp.einsum("bsd,de->bse", nx, wk)
    v = jnp.einsum("bsd,de->bse", nx, wv)
    logits = jnp.einsum("bqd,bkd->bqk", q, k) / math.sqrt(x.shape[-1])
    attn = jax.nn.softmax(logits, axis=-1)
    return x + jnp.einsum("bqk,bkd->bqd", attn, v), attn


if __name__ == "__main__":
    B, S, D = 2, 8, 32
    key = jax.random.PRNGKey(0)
    kx, kw, kb, kq, kk, kv = jax.random.split(key, 6)

    x = jax.random.normal(kx, (B, S, D), dtype=jnp.float32)

    # LayerNorm params: per the module's __init__, both a and b init to ones.
    ln_a = jnp.ones((D,), dtype=jnp.float32)
    ln_b = jnp.ones((D,), dtype=jnp.float32)

    # Sublayer params (deterministic synthetic init).
    w = jax.random.normal(kw, (D, D), dtype=jnp.float32) * 0.1
    bias = jax.random.normal(kb, (D,), dtype=jnp.float32) * 0.1
    wq = jax.random.normal(kq, (D, D), dtype=jnp.float32) * 0.1
    wk = jax.random.normal(kk, (D, D), dtype=jnp.float32) * 0.1
    wv = jax.random.normal(kv, (D, D), dtype=jnp.float32) * 0.1

    # self_attn_flag = False path
    y_ffn = jax.block_until_ready(resnet_ffn(x, ln_a, ln_b, w, bias))
    y_ffn_ref = _ref_ffn(x, ln_a, ln_b, w, bias)
    assert jnp.allclose(y_ffn, y_ffn_ref, atol=1e-3, rtol=1e-3)

    # self_attn_flag = True path (looser tolerance: EUP approx-reciprocal softmax)
    y_attn, scores = resnet_self_attn(x, ln_a, ln_b, wq, wk, wv)
    y_attn = jax.block_until_ready(y_attn)
    scores = jax.block_until_ready(scores)
    y_attn_ref, scores_ref = _ref_attn(x, ln_a, ln_b, wq, wk, wv)
    assert jnp.allclose(y_attn, y_attn_ref, atol=5e-3, rtol=5e-3)
    assert jnp.allclose(scores, scores_ref, atol=5e-3, rtol=5e-3)

    print("KERNEL_OK")
</pallas_src>

<mosaic_0001>
module attributes {stable_mosaic.version = 11 : i64} {
  func.func @_resnet_ffn_kernel(%arg0: i32, %arg1: memref<16x32xf32, #tpu.memory_space<vmem>>, %arg2: memref<1x32xf32, #tpu.memory_space<vmem>>, %arg3: memref<1x32xf32, #tpu.memory_space<vmem>>, %arg4: memref<32x32xf32, #tpu.memory_space<vmem>>, %arg5: memref<1x32xf32, #tpu.memory_space<vmem>>, %arg6: memref<16x32xf32, #tpu.memory_space<vmem>>) attributes {dimension_semantics = [#tpu.dimension_semantics<parallel>], iteration_bounds = array<i64: 1>, scalar_prefetch = 0 : i64, scratch_operands = 0 : i64, tpu.core_type = #tpu.core_type<tc>, window_params = [{transform_indices = @transform_0, window_bounds = array<i64: 16, 32>}, {pipeline_mode = #tpu.pipeline_mode<synchronous>, transform_indices = @transform_1, window_bounds = array<i64: 1, 32>}, {pipeline_mode = #tpu.pipeline_mode<synchronous>, transform_indices = @transform_2, window_bounds = array<i64: 1, 32>}, {pipeline_mode = #tpu.pipeline_mode<synchronous>, transform_indices = @transform_3, window_bounds = array<i64: 32, 32>}, {pipeline_mode = #tpu.pipeline_mode<synchronous>, transform_indices = @transform_4, window_bounds = array<i64: 1, 32>}, {transform_indices = @transform_5, window_bounds = array<i64: 16, 32>}]} {
    %c0 = arith.constant 0 : index
    %c0_0 = arith.constant 0 : index
    %0 = vector.load %arg1[%c0, %c0_0] : memref<16x32xf32, #tpu.memory_space<vmem>>, vector<16x32xf32>
    %c0_1 = arith.constant 0 : index
    %c0_2 = arith.constant 0 : index
    %1 = vector.load %arg2[%c0_1, %c0_2] : memref<1x32xf32, #tpu.memory_space<vmem>>, vector<1x32xf32>
    %2 = vector.shape_cast %1 : vector<1x32xf32> to vector<32xf32>
    %c0_3 = arith.constant 0 : index
    %c0_4 = arith.constant 0 : index
    %3 = vector.load %arg3[%c0_3, %c0_4] : memref<1x32xf32, #tpu.memory_space<vmem>>, vector<1x32xf32>
    %4 = vector.shape_cast %3 : vector<1x32xf32> to vector<32xf32>
    %cst = arith.constant dense<0.000000e+00> : vector<16xf32>
    %5 = vector.multi_reduction <add>, %0, %cst [1] : vector<16x32xf32> to vector<16xf32>
    %6 = vector.shape_cast %5 : vector<16xf32> to vector<16x1xf32>
    %cst_5 = arith.constant 3.200000e+01 : f32
    %7 = vector.broadcast %cst_5 : f32 to vector<16x1xf32>
    %8 = arith.divf %6, %7 : vector<16x1xf32>
    %9 = vector.broadcast %8 : vector<16x1xf32> to vector<16x32xf32>
    %10 = arith.subf %0, %9 : vector<16x32xf32>
    %11 = arith.mulf %10, %10 : vector<16x32xf32>
    %cst_6 = arith.constant dense<0.000000e+00> : vector<16xf32>
    %12 = vector.multi_reduction <add>, %11, %cst_6 [1] : vector<16x32xf32> to vector<16xf32>
    %13 = vector.shape_cast %12 : vector<16xf32> to vector<16x1xf32>
    %cst_7 = arith.constant 0.0322580636 : f32
    %14 = vector.broadcast %cst_7 : f32 to vector<16x1xf32>
    %15 = arith.mulf %13, %14 : vector<16x1xf32>
    %16 = math.sqrt %15 : vector<16x1xf32>
    %cst_8 = arith.constant 9.99999997E-7 : f32
    %17 = vector.broadcast %cst_8 : f32 to vector<16x1xf32>
    %18 = arith.addf %16, %17 : vector<16x1xf32>
    %19 = tpu.reciprocal %18 : vector<16x1xf32> -> vector<16x1xf32>
    %20 = vector.broadcast %8 : vector<16x1xf32> to vector<16x32xf32>
    %21 = arith.subf %0, %20 : vector<16x32xf32>
    %22 = vector.shape_cast %2 : vector<32xf32> to vector<1x32xf32>
    %23 = vector.broadcast %22 : vector<1x32xf32> to vector<16x32xf32>
    %24 = arith.mulf %23, %21 : vector<16x32xf32>
    %25 = vector.broadcast %19 : vector<16x1xf32> to vector<16x32xf32>
    %26 = arith.mulf %24, %25 : vector<16x32xf32>
    %27 = vector.shape_cast %4 : vector<32xf32> to vector<1x32xf32>
    %28 = vector.broadcast %27 : vector<1x32xf32> to vector<16x32xf32>
    %29 = arith.addf %26, %28 : vector<16x32xf32>
    %c0_9 = arith.constant 0 : index
    %c0_10 = arith.constant 0 : index
    %30 = vector.load %arg4[%c0_9, %c0_10] : memref<32x32xf32, #tpu.memory_space<vmem>>, vector<32x32xf32>
    %cst_11 = arith.constant dense<0.000000e+00> : vector<16x32xf32>
    %31 = tpu.matmul %29, %30, %cst_11 {dimension_numbers = #tpu.dot_dimension_numbers<[1], [0], [0], [1], [0, 0, 1, 1], [], []>} : vector<16x32xf32>, vector<32x32xf32>, vector<16x32xf32> -> vector<16x32xf32>
    %c0_12 = arith.constant 0 : index
    %c0_13 = arith.constant 0 : index
    %32 = vector.load %arg5[%c0_12, %c0_13] : memref<1x32xf32, #tpu.memory_space<vmem>>, vector<1x32xf32>
    %33 = vector.shape_cast %32 : vector<1x32xf32> to vector<32xf32>
    %34 = vector.shape_cast %33 : vector<32xf32> to vector<1x32xf32>
    %35 = vector.broadcast %34 : vector<1x32xf32> to vector<16x32xf32>
    %36 = arith.addf %31, %35 : vector<16x32xf32>
    %37 = arith.addf %0, %36 : vector<16x32xf32>
    %c0_14 = arith.constant 0 : index
    %c0_15 = arith.constant 0 : index
    %38 = vector.load %arg6[%c0_14, %c0_15] : memref<16x32xf32, #tpu.memory_space<vmem>>, vector<16x32xf32>
    tpu.vector_store %arg6[%c0_14, %c0_15], %37 {strides = array<i32>} : memref<16x32xf32, #tpu.memory_space<vmem>>, vector<16x32xf32>,
    return
  }
  func.func @transform_0(%arg0: i32) -> (i32, i32) {
    %c0_i32 = arith.constant 0 : i32
    %c0_i32_0 = arith.constant 0 : i32
    return %arg0, %c0_i32 : i32, i32
  }
  func.func @transform_1(%arg0: i32) -> (i32, i32) {
    %c0_i32 = arith.constant 0 : i32
    %c0_i32_0 = arith.constant 0 : i32
    %c0_i32_1 = arith.constant 0 : i32
    return %c0_i32, %c0_i32_0 : i32, i32
  }
  func.func @transform_2(%arg0: i32) -> (i32, i32) {
    %c0_i32 = arith.constant 0 : i32
    %c0_i32_0 = arith.constant 0 : i32
    %c0_i32_1 = arith.constant 0 : i32
    return %c0_i32, %c0_i32_0 : i32, i32
  }
  func.func @transform_3(%arg0: i32) -> (i32, i32) {
    %c0_i32 = arith.constant 0 : i32
    %c0_i32_0 = arith.constant 0 : i32
    %c0_i32_1 = arith.constant 0 : i32
    return %c0_i32, %c0_i32_0 : i32, i32
  }
  func.func @transform_4(%arg0: i32) -> (i32, i32) {
    %c0_i32 = arith.constant 0 : i32
    %c0_i32_0 = arith.constant 0 : i32
    %c0_i32_1 = arith.constant 0 : i32
    return %c0_i32, %c0_i32_0 : i32, i32
  }
  func.func @transform_5(%arg0: i32) -> (i32, i32) {
    %c0_i32 = arith.constant 0 : i32
    %c0_i32_0 = arith.constant 0 : i32
    return %arg0, %c0_i32 : i32, i32
  }
}

</mosaic_0001>

<llo_original>
// kernel: tpu_custom_call.1
$region0: #{tpu_custom_call.1}
  #allocation0 [shape = 'u32[]', space=smem, size = 0x4, offset = 0x4, fixed_abs, tag = 'smem constant byte address 0x4 - core index']
  #allocation1 [shape = 'u32[72,128]{1,0:T(1,128)}', space=vmem, size = 0x9000, scoped, tag = 'internal scratch']
  %s0 = inlined_call_operand.hbm [shape: f32[16,32], index: 0, kind: input, shape index: {}]
  %s1 = inlined_call_operand.hbm [shape: f32[1,32], index: 1, kind: input, shape index: {}]
  %s2 = inlined_call_operand.vmem [shape: f32[1,32], index: 2, kind: input, shape index: {}]
  %s3 = inlined_call_operand.hbm [shape: f32[32,32], index: 3, kind: input, shape index: {}]
  %s4 = inlined_call_operand.vmem [shape: f32[1,32], index: 4, kind: input, shape index: {}]
  %s5 = inlined_call_operand.hbm [shape: f32[16,32], index: 5, kind: output, shape index: {}]
  %s6 = sld [smem:[#allocation0]]
  $region42: #{tpu_custom_call.1} parent=0
    _
  %s8 = ssub.s32 1, %s6
  %s9 = scalar_select 0, %s8, %s6
  $region1: #{tpu_custom_call.1} parent=0
    #allocation2 [shape = 'u8[8192]{0}', space=vmem, size = 0x2000, scoped, tag = 'input window, operand 0, single buffered']
    #allocation3 [shape = 's32[1]{0}', space=sflag, size = 0x4, scoped, tag = 'scoped memory for tpu_custom_call.1']
    #allocation4 [shape = 's32[1]{0}', space=sflag, size = 0x4, scoped, tag = 'scoped memory for tpu_custom_call.1']
    #allocation5 [shape = 'u8[512]{0}', space=vmem, size = 0x400, scoped, tag = 'input window, operand 1, single buffered']
    #allocation6 [shape = 's32[1]{0}', space=sflag, size = 0x4, scoped, tag = 'scoped memory for tpu_custom_call.1']
    #allocation7 [shape = 'u8[16384]{0}', space=vmem, size = 0x4000, scoped, tag = 'input window, operand 3, single buffered']
    #allocation8 [shape = 'u8[8192]{0}', space=vmem, size = 0x2000, scoped, tag = 'output window, operand 0, single buffered']
    %10 = vsyncpa [#allocation3], 0
    %11 = vsyncpa [#allocation6], 0
    %12 = vsyncpa [#allocation4], 0
    // Predicated region
    $region2: #{tpu_custom_call.1} parent=1 // pred_check
      _
    $region3: #{tpu_custom_call.1} parent=1 // pred_check_branch
      %14 = sbr.rel (0) target = $region5
    $region4: #{tpu_custom_call.1} parent=1 // pred_region
      %16 = vsyncadd [#allocation3], 0
      %s17 = sshll.u32 %s0, 4
      %s18 = int_to_ptr.hbm [resolvable:$true] %s17
      %s19 = sshll.u32 [#allocation2], 4
      %s20 = int_to_ptr.vmem [resolvable:$true] %s19
      %25 = dma.hbm_to_vmem [thread:$0]  %s18, 256, %s20, [#allocation3], 128, 128, 8
    $region5: #{tpu_custom_call.1} parent=1 // pred_fallthru
      _
    // Predicated region
    $region6: #{tpu_custom_call.1} parent=1 // pred_check
      _
    $region7: #{tpu_custom_call.1} parent=1 // pred_check_branch
      %27 = sbr.rel (0) target = $region9
    $region8: #{tpu_custom_call.1} parent=1 // pred_region
      %29 = vsyncadd [#allocation6], 0
      %s31 = sshll.u32 %s1, 4
      %s32 = int_to_ptr.hbm [resolvable:$true] %s31
      %s33 = sshll.u32 [#allocation5], 4
      %s34 = int_to_ptr.vmem [resolvable:$true] %s33
      %36 = dma.hbm_to_vmem [thread:$0]  %s32, 16, %s34, [#allocation6]
    $region9: #{tpu_custom_call.1} parent=1 // pred_fallthru
      _
    // Predicated region
    $region10: #{tpu_custom_call.1} parent=1 // pred_check
      _
    $region11: #{tpu_custom_call.1} parent=1 // pred_check_branch
      %38 = sbr.rel (0) target = $region13
    $region12: #{tpu_custom_call.1} parent=1 // pred_region
      _
    $region13: #{tpu_custom_call.1} parent=1 // pred_fallthru
      _
    // Predicated region
    $region14: #{tpu_custom_call.1} parent=1 // pred_check
      _
    $region15: #{tpu_custom_call.1} parent=1 // pred_check_branch
      %40 = sbr.rel (0) target = $region17
    $region16: #{tpu_custom_call.1} parent=1 // pred_region
      %42 = vsyncadd [#allocation6], 0
      %s43 = sshll.u32 %s3, 4
      %s44 = int_to_ptr.hbm [resolvable:$true] %s43
      %s45 = sshll.u32 [#allocation7], 4
      %s46 = int_to_ptr.vmem [resolvable:$true] %s45
      %51 = dma.hbm_to_vmem [thread:$0]  %s44, 512, %s46, [#allocation6], 128, 128, 8
    $region17: #{tpu_custom_call.1} parent=1 // pred_fallthru
      _
    // Predicated region
    $region18: #{tpu_custom_call.1} parent=1 // pred_check
      _
    $region19: #{tpu_custom_call.1} parent=1 // pred_check_branch
      %53 = sbr.rel (0) target = $region21
    $region20: #{tpu_custom_call.1} parent=1 // pred_region
      _
    $region21: #{tpu_custom_call.1} parent=1 // pred_fallthru
      _
    // Predicated region
    $region22: #{tpu_custom_call.1} parent=1 // pred_check
      _
    $region23: #{tpu_custom_call.1} parent=1 // pred_check_branch
      %55 = sbr.rel (0) target = $region25
    $region24: #{tpu_custom_call.1} parent=1 // pred_region
      %57 = dma.done [#allocation3], 256
    $region25: #{tpu_custom_call.1} parent=1 // pred_fallthru
      _
    // Predicated region
    $region26: #{tpu_custom_call.1} parent=1 // pred_check
      _
    $region27: #{tpu_custom_call.1} parent=1 // pred_check_branch
      %59 = sbr.rel (0) target = $region29
    $region28: #{tpu_custom_call.1} parent=1 // pred_region
      %61 = dma.done [#allocation6], 16
    $region29: #{tpu_custom_call.1} parent=1 // pred_fallthru
      _
    // Predicated region
    $region30: #{tpu_custom_call.1} parent=1 // pred_check
      _
    $region31: #{tpu_custom_call.1} parent=1 // pred_check_branch
      %63 = sbr.rel (0) target = $region33
    $region32: #{tpu_custom_call.1} parent=1 // pred_region
      %65 = dma.done [#allocation6], 512
    $region33: #{tpu_custom_call.1} parent=1 // pred_fallthru
      _
    %v66 = vld [vmem:[#allocation2] sm:$0xff]
    %v67 = vld [vmem:[#allocation2 + $0x8] sm:$0xff]
    %v68 = vld [vmem:[#allocation5] sm:$0x1]
    %v69 = vld [vmem:[%s2] sm:$0x1]
    %vm70 = vcmask 261120
    %v71 = vsel %vm70, %v66, 0.0
    %72 = vadd.xlane.f32.xlu0 %v71
    %v73 = vpop.xlane.xlu0 %72
    %v74 = vsel %vm70, %v67, 0.0
    %75 = vadd.xlane.f32.xlu0 %v74
    %v76 = vpop.xlane.xlu0 %75
    %v77 = vrcp.pop 32.0
    %v78 = vmul.f32 32.0, %v77
    %v79 = vsub.f32 1.0, %v78
    %v80 = vmul.f32 %v77, %v79
    %v81 = vadd.f32 %v77, %v80
    %vm82 = vweird.f32 %v77
    %v83 = vsel %vm82, %v77, %v81
    %v84 = vmul.f32 %v73, %v83
    %v85 = vmul.f32 %v76, %v83
    %v86 = vsub.f32 %v66, %v84
    %v87 = vsub.f32 %v67, %v85
    %v88 = vmul.f32 %v86, %v86
    %v89 = vmul.f32 %v87, %v87
    %v90 = vsel %vm70, %v88, 0.0
    %91 = vadd.xlane.f32.xlu0 %v90
    %v92 = vpop.xlane.xlu0 %91
    %v93 = vsel %vm70, %v89, 0.0
    %94 = vadd.xlane.f32.xlu0 %v93
    %v95 = vpop.xlane.xlu0 %94
    %v96 = vmul.f32 %v92, 0.032258064
    %v97 = vmul.f32 %v95, 0.032258064
    %v98 = vrsqrt.pop %v96
    %v99 = vmul.f32 %v98, %v96
    %v100 = vmul.f32 %v99, %v98
    %v101 = vmul.f32 0.5, %v100
    %v102 = vsub.f32 1.5, %v101
    %v103 = vmul.f32 %v98, %v102
    %v104 = vmul.f32 %v96, %v103
    %vm105 = vcmp.eq.f32.partialorder %v96, inf
    %v106 = vsel %vm105, %v96, %v104
    %vm107 = vcmp.eq.f32.partialorder %v96, 0.0
    %v108 = vand.u32 %v96, 2147483648
    %v109 = vsel %vm107, %v108, %v106
    %v110 = vrsqrt.pop %v97
    %v111 = vmul.f32 %v110, %v97
    %v112 = vmul.f32 %v111, %v110
    %v113 = vmul.f32 0.5, %v112
    %v114 = vsub.f32 1.5, %v113
    %v115 = vmul.f32 %v110, %v114
    %v116 = vmul.f32 %v97, %v115
    %vm117 = vcmp.eq.f32.partialorder %v97, inf
    %v118 = vsel %vm117, %v97, %v116
    %vm119 = vcmp.eq.f32.partialorder %v97, 0.0
    %v120 = vand.u32 %v97, 2147483648
    %v121 = vsel %vm119, %v120, %v118
    %v122 = vadd.f32 %v109, 1e-06
    %v123 = vadd.f32 %v121, 1e-06
    %v124 = vrcp.pop %v122
    %v125 = vmul.f32 %v122, %v124
    %v126 = vsub.f32 1.0, %v125
    %v127 = vmul.f32 %v124, %v126
    %v128 = vadd.f32 %v124, %v127
    %vm129 = vweird.f32 %v122
    %vm130 = vweird.f32 %v124
    %vm131 = vmor %vm129, %vm130
    %v132 = vsel %vm131, %v124, %v128
    %v133 = vand.u32 2147483647, %v122
    %vm134 = vcmp.eq.f32.partialorder %v133, 8.507059e+37
    %v135 = vand.u32 %v122, 2147483648
    %v136 = vor.u32 1.1754944e-38, %v135
    %v137 = vsel %vm134, %v136, %v132
    %v138 = vrcp.pop %v123
    %v139 = vmul.f32 %v123, %v138
    %v140 = vsub.f32 1.0, %v139
    %v141 = vmul.f32 %v138, %v140
    %v142 = vadd.f32 %v138, %v141
    %vm143 = vweird.f32 %v123
    %vm144 = vweird.f32 %v138
    %vm145 = vmor %vm143, %vm144
    %v146 = vsel %vm145, %v138, %v142
    %v147 = vand.u32 2147483647, %v123
    %vm148 = vcmp.eq.f32.partialorder %v147, 8.507059e+37
    %v149 = vand.u32 %v123, 2147483648
    %v150 = vor.u32 1.1754944e-38, %v149
    %v151 = vsel %vm148, %v150, %v146
    %v153 = vperm.slane %v68, 0
    %v155 = vmul.f32 %v153, %v86
    %v156 = vmul.f32 %v153, %v87
    %v157 = vmul.f32 %v155, %v137
    %v158 = vmul.f32 %v156, %v151
    %v160 = vperm.slane %v69, 0
    %v162 = vadd.f32 %v157, %v160
    %v163 = vadd.f32 %v158, %v160
    %v164 = vld [vmem:[#allocation7] sm:$0xff]
    %v165 = vld [vmem:[#allocation7 + $0x8] sm:$0xff]
    %v166 = vld [vmem:[#allocation7 + $0x10] sm:$0xff]
    %v167 = vld [vmem:[#allocation7 + $0x18] sm:$0xff]
    %v168 = vld [vmem:[%s4] sm:$0x1]
    %v170 = vperm.slane %v168, 0
    %v173 = vsel %vm70, %v162, 0
    %v176 = vsel %vm70, %v163, 0
    %178 = vmatpush.msra.mxu0 0.0
    %179 = vmatpush.msra.mxu0 0.0
    %180 = vmatpush.msra.mxu0 0.0
    %181 = vmatpush.msra.mxu0 0.0
    %182 = vmatpush.msra.mxu0 0.0
    %183 = vmatpush.msra.mxu0 0.0
    %184 = vmatpush.msra.mxu0 0.0
    %185 = vmatpush.msra.mxu0 0.0
    %186 = vmatpush.msra.mxu0 0.0
    %187 = vmatpush.msra.mxu0 0.0
    %188 = vmatpush.msra.mxu0 0.0
    %189 = vmatpush.msra.mxu0 0.0
    %190 = vmatpush.msra.mxu0 %v167
    %191 = vmatpush.msra.mxu0 %v166
    %192 = vmatpush.msra.mxu0 %v165
    %193 = vmatpush.msra.mxu0 %v164
    %194 = vmatmul.f32.gmra.mxu0 %v173
    %v195 = vpop.f32.mrf.mxu0
    %v196 = vadd.f32 %v170, %v195
    %197 = vmatmul.f32.gmra.mxu0 %v176
    %v198 = vpop.f32.mrf.mxu0
    %v199 = vadd.f32 %v170, %v198
    %200 = vdwg.mxu0
    %v201 = vadd.f32 %v66, %v196
    %v202 = vadd.f32 %v67, %v199
    %203 = vst.msk [vmem:[#allocation8] sm:$0xff] %vm70, %v201
    %204 = vst.msk [vmem:[#allocation8 + $0x8] sm:$0xff] %vm70, %v202
    // Predicated region
    $region34: #{tpu_custom_call.1} parent=1 // pred_check
      _
    $region35: #{tpu_custom_call.1} parent=1 // pred_check_branch
      %206 = sbr.rel (0) target = $region37
    $region36: #{tpu_custom_call.1} parent=1 // pred_region
      %208 = vsyncadd [#allocation4], 0
      %s209 = sshll.u32 [#allocation8], 4
      %s210 = int_to_ptr.vmem [resolvable:$true] %s209
      %s211 = sshll.u32 %s5, 4
      %s212 = int_to_ptr.hbm [resolvable:$true] %s211
      %217 = dma.vmem_to_hbm [thread:$0]  %s210, 256, %s212, [#allocation4], 128, 128, 8
    $region37: #{tpu_custom_call.1} parent=1 // pred_fallthru
      _
    // Predicated region
    $region38: #{tpu_custom_call.1} parent=1 // pred_check
      _
    $region39: #{tpu_custom_call.1} parent=1 // pred_check_branch
      %219 = sbr.rel (0) target = $region41
    $region40: #{tpu_custom_call.1} parent=1 // pred_region
      %221 = dma.done [#allocation4], 256
    $region41: #{tpu_custom_call.1} parent=1 // pred_fallthru
      _
    %222 = vsyncpa [#allocation3], 1
    %223 = vsyncpa [#allocation6], 1
    %224 = vsyncpa [#allocation4], 1

</llo_original>
